<compile_context>
chip_gen: v5e
topology: v5e:2x2
jax: 0.10.0
libtpu: 0.0.40
codegen_flags: <defaults>
</compile_context>

<pallas_src>
import functools

import jax
import jax.numpy as jnp
from jax import lax
from jax.experimental import pallas as pl
from jax.experimental.pallas import tpu as pltpu

_LANE_CHOICES = (512, 256, 128)


# ---------------------------------------------------------------------------
# Hardware / layout helpers (all static, trace-time Python)
# ---------------------------------------------------------------------------
@functools.lru_cache(maxsize=None)
def _tpu_params():
    """(vmem_capacity_bytes, tensorcores_per_device) with safe fallbacks."""
    vmem = 64 * 1024 * 1024          # conservative default (v7x-sized)
    cores = 1
    try:
        info = pltpu.get_tpu_info()
        v = getattr(info, "vmem_capacity_bytes", None)
        if v:
            vmem = int(v)
        for attr in ("num_tensorcores", "tensorcore_count", "num_cores",
                     "cores_per_chip"):
            c = getattr(info, attr, None)
            if isinstance(c, int) and c > 0:
                cores = c
                break
    except Exception:
        pass
    if cores == 1:
        try:
            kind = jax.devices()[0].device_kind.lower()
            # megacore / dual-TC per-device parts
            if ("v4" in kind) or ("v5p" in kind) or ("v7" in kind):
                cores = 2
        except Exception:
            pass
    return vmem, cores


def _choose_layout(shape, n):
    """Pick a lane-dense 2D view (rows, w) of the flat tensor with a FREE reshape.

    Prefers a wide lane width that divides n exactly; otherwise collapses to
    (prod(leading_dims), last_dim) which is always copy-free (the last block
    dim is then the full array extent, accepted by Pallas).  No padding copies
    on any path."""
    for w in _LANE_CHOICES:
        if n >= w and n % w == 0:
            return n // w, w
    last = shape[-1] if len(shape) >= 1 else 1
    last = max(1, int(last))
    # NOTE: a non-128-divisible tensor with a multi-MiB last dim would make a
    # single block too large; such shapes do not occur for image losses.
    return max(1, n // last), last


def _choose_block_rows(rows, w_lanes, itemsize, n_streams, vmem_cap):
    """Block row count: big blocks (amortize ~0.35us/step) within a VMEM budget."""
    sub = max(8, 32 // max(1, itemsize))          # 8 (f32), 16 (bf16), 32 (i8)
    target = (8 << 20) if vmem_cap >= (96 << 20) else (4 << 20)
    budget = max(1 << 20, int(vmem_cap * 0.7) // max(1, 2 * n_streams))
    blk = min(target, budget)
    br = max(sub, (blk // (w_lanes * itemsize)) // sub * sub)
    if rows <= br:
        return rows, 1                            # single full-extent block
    return br, pl.cdiv(rows, br)


def _compiler_params(semantics, n_streams, block_bytes, itemsize_unused=None):
    # footprint-derived limit: streams are double-buffered; accumulators are tiny
    limit = n_streams * 2 * block_bytes + (4 << 20)
    limit = int(min(max(limit, 32 << 20), 128 << 20))
    return pltpu.CompilerParams(dimension_semantics=semantics,
                                vmem_limit_bytes=limit)


# ---------------------------------------------------------------------------
# Reduction kernels (per-lane partial sums, VMEM-resident accumulators)
# ---------------------------------------------------------------------------
def _sq_sum_kernel(p_ref, t_ref, sq_ref, *, br, rows, g2, acc_rows,
                   two_axes, maybe_ragged):
    if two_axes:
        i, j = pl.program_id(0), pl.program_id(1)
    else:
        i, j = 0, pl.program_id(0)

    @pl.when(j == 0)
    def _():
        sq_ref[...] = jnp.zeros_like(sq_ref)

    d = p_ref[...].astype(jnp.float32) - t_ref[...].astype(jnp.float32)
    dd = d * d

    def accum(vals):
        if acc_rows == 8:
            part = vals.reshape(-1, 8, vals.shape[-1]).sum(axis=0)
        else:
            part = jnp.sum(vals, axis=0, keepdims=True)
        sq_ref[...] += part.reshape(sq_ref.shape)

    if maybe_ragged:
        row0 = (i * g2 + j) * br
        ragged = row0 + br > rows

        @pl.when(ragged)
        def _():
            ridx = lax.broadcasted_iota(jnp.int32, dd.shape, 0) + row0
            accum(jnp.where(ridx < rows, dd, 0.0))

        @pl.when(jnp.logical_not(ragged))
        def _():
            accum(dd)
    else:
        accum(dd)


def _wsq_sum_kernel(p_ref, t_ref, w_ref, sq_ref, ws_ref, *, br, rows, g2,
                    acc_rows, two_axes, maybe_ragged):
    if two_axes:
        i, j = pl.program_id(0), pl.program_id(1)
    else:
        i, j = 0, pl.program_id(0)

    @pl.when(j == 0)
    def _():
        sq_ref[...] = jnp.zeros_like(sq_ref)
        ws_ref[...] = jnp.zeros_like(ws_ref)

    d = p_ref[...].astype(jnp.float32) - t_ref[...].astype(jnp.float32)
    wt = w_ref[...].astype(jnp.float32)
    lw = d * d * wt

    def accum(ref, vals):
        if acc_rows == 8:
            part = vals.reshape(-1, 8, vals.shape[-1]).sum(axis=0)
        else:
            part = jnp.sum(vals, axis=0, keepdims=True)
        ref[...] += part.reshape(ref.shape)

    if maybe_ragged:
        row0 = (i * g2 + j) * br
        ragged = row0 + br > rows

        @pl.when(ragged)
        def _():
            ridx = lax.broadcasted_iota(jnp.int32, lw.shape, 0) + row0
            valid = ridx < rows
            accum(sq_ref, jnp.where(valid, lw, 0.0))
            accum(ws_ref, jnp.where(valid, wt, 0.0))

        @pl.when(jnp.logical_not(ragged))
        def _():
            accum(sq_ref, lw)
            accum(ws_ref, wt)
    else:
        accum(sq_ref, lw)
        accum(ws_ref, wt)


# ---------------------------------------------------------------------------
# Elementwise ('none') kernels
# ---------------------------------------------------------------------------
def _ew_kernel(p_ref, t_ref, o_ref, *, loss_weight):
    d = p_ref[...].astype(jnp.float32) - t_ref[...].astype(jnp.float32)
    r = d * d
    if loss_weight != 1.0:
        r = r * jnp.float32(loss_weight)
    o_ref[...] = r.astype(o_ref.dtype)


def _ew_w_kernel(p_ref, t_ref, w_ref, o_ref, *, loss_weight):
    d = p_ref[...].astype(jnp.float32) - t_ref[...].astype(jnp.float32)
    r = d * d * w_ref[...].astype(jnp.float32)
    if loss_weight != 1.0:
        r = r * jnp.float32(loss_weight)
    o_ref[...] = r.astype(o_ref.dtype)


def _ew_sw_kernel(p_ref, t_ref, w_ref, o_ref, *, loss_weight):
    # scalar weight held in SMEM
    d = p_ref[...].astype(jnp.float32) - t_ref[...].astype(jnp.float32)
    r = d * d * w_ref[0]
    if loss_weight != 1.0:
        r = r * jnp.float32(loss_weight)
    o_ref[...] = r.astype(o_ref.dtype)


# ---------------------------------------------------------------------------
# Wrapper
# ---------------------------------------------------------------------------
@functools.partial(jax.jit, static_argnames=("reduction", "loss_weight", "has_weight"))
def _mse_loss_impl(pred, target, weight, *, reduction, loss_weight, has_weight):
    orig_shape = pred.shape
    n = pred.size
    out_dtype = jnp.result_type(pred.dtype, target.dtype)

    vmem_cap, n_cores = _tpu_params()

    # --- classify the optional weight (all static decisions) ----------------
    w_orig = weight
    w_mode = "none"
    if has_weight:
        out_dtype = jnp.result_type(out_dtype, weight.dtype)
        if weight.shape == pred.shape:
            w_mode = "full"                 # stream as-is, own dtype
        elif weight.size == 1:
            w_mode = "scalar"               # fold as scalar (no broadcast pass)
        else:
            # TODO(synk): exotic broadcast weights (e.g. (N,1,H,W) masks) still
            # materialize the broadcast; an in-kernel broadcast over the original
            # N-D shape would save one HBM pass here.
            weight = jnp.broadcast_to(weight, pred.shape)
            w_mode = "full"

    if n == 0:
        if reduction == "none":
            return jnp.zeros(orig_shape, out_dtype)
        val = jnp.float32(0.0) if reduction == "sum" else jnp.float32(jnp.nan)
        return (jnp.float32(loss_weight) * val).astype(out_dtype)

    itemsize = max(pred.dtype.itemsize, target.dtype.itemsize)
    if w_mode == "full":
        itemsize = max(itemsize, weight.dtype.itemsize)

    rows, w_lanes = _choose_layout(orig_shape, n)
    p2d = pred.reshape(rows, w_lanes)           # free reshapes, no pad copies
    t2d = target.reshape(rows, w_lanes)
    w2d = weight.reshape(rows, w_lanes) if w_mode == "full" else None

    # -------------------------- reduction == 'none' --------------------------
    if reduction == "none":
        n_streams = (3 if w_mode == "full" else 2) + 1     # VMEM streams incl. out
        br, g = _choose_block_rows(rows, w_lanes, itemsize, n_streams, vmem_cap)
        blk_bytes = br * w_lanes * itemsize
        ew_spec = pl.BlockSpec((br, w_lanes), lambda i: (i, 0))
        cparams = _compiler_params(("parallel",), n_streams, blk_bytes)
        cost = pl.CostEstimate(flops=(4 if w_mode != "none" else 3) * n,
                               transcendentals=0,
                               bytes_accessed=n_streams * n * itemsize)

        if w_mode == "full":
            kern = functools.partial(_ew_w_kernel, loss_weight=loss_weight)
            in_specs = [ew_spec, ew_spec, ew_spec]
            args = (p2d, t2d, w2d)
        elif w_mode == "scalar":
            kern = functools.partial(_ew_sw_kernel, loss_weight=loss_weight)
            in_specs = [ew_spec, ew_spec,
                        pl.BlockSpec(memory_space=pltpu.MemorySpace.SMEM)]
            args = (p2d, t2d, w_orig.reshape(1).astype(jnp.float32))
        else:
            kern = functools.partial(_ew_kernel, loss_weight=loss_weight)
            in_specs = [ew_spec, ew_spec]
            args = (p2d, t2d)

        out2d = pl.pallas_call(
            kern,
            out_shape=jax.ShapeDtypeStruct((rows, w_lanes), out_dtype),
            grid_spec=pltpu.PrefetchScalarGridSpec(
                num_scalar_prefetch=0, grid=(g,),
                in_specs=in_specs, out_specs=ew_spec),
            compiler_params=cparams,
            cost_estimate=cost,
        )(*args)
        return out2d.reshape(orig_shape)

    # ------------------------ reduction in ('mean','sum') --------------------
    use_w_kernel = (w_mode == "full")
    n_streams = 3 if use_w_kernel else 2
    br, g = _choose_block_rows(rows, w_lanes, itemsize, n_streams, vmem_cap)
    blk_bytes = br * w_lanes * itemsize

    nc = min(n_cores, g) if n_cores > 1 else 1
    if nc > 1:
        g2 = pl.cdiv(g, nc)
        grid = (nc, g2)
        semantics = ("parallel", "arbitrary")
        in_spec = pl.BlockSpec(
            (br, w_lanes), lambda i, j: (jnp.minimum(i * g2 + j, g - 1), 0))
        acc_index = lambda i, j: (i, 0, 0)
        two_axes = True
    else:
        g2 = g
        grid = (g,)
        semantics = ("arbitrary",)
        in_spec = pl.BlockSpec((br, w_lanes), lambda i: (i, 0))
        acc_index = lambda i: (0, 0, 0)
        two_axes = False

    maybe_ragged = (nc * g2 * br) != rows
    acc_rows = 8 if (br % 8 == 0) else 1
    acc_spec = pl.BlockSpec((1, acc_rows, w_lanes), acc_index)
    cparams = _compiler_params(semantics, n_streams, blk_bytes)
    common = dict(br=br, rows=rows, g2=g2, acc_rows=acc_rows,
                  two_axes=two_axes, maybe_ragged=maybe_ragged)

    if use_w_kernel:
        cost = pl.CostEstimate(flops=5 * n, transcendentals=0,
                               bytes_accessed=3 * n * itemsize)
        sq_part, ws_part = pl.pallas_call(
            functools.partial(_wsq_sum_kernel, **common),
            out_shape=(jax.ShapeDtypeStruct((nc, acc_rows, w_lanes), jnp.float32),
                       jax.ShapeDtypeStruct((nc, acc_rows, w_lanes), jnp.float32)),
            grid_spec=pltpu.PrefetchScalarGridSpec(
                num_scalar_prefetch=0, grid=grid,
                in_specs=[in_spec, in_spec, in_spec],
                out_specs=[acc_spec, acc_spec]),
            compiler_params=cparams,
            cost_estimate=cost,
        )(p2d, t2d, w2d)
        total = jnp.sum(sq_part)
        wsum_kernel = jnp.sum(ws_part)
    else:
        cost = pl.CostEstimate(flops=3 * n, transcendentals=0,
                               bytes_accessed=2 * n * itemsize)
        sq_part = pl.pallas_call(
            functools.partial(_sq_sum_kernel, **common),
            out_shape=jax.ShapeDtypeStruct((nc, acc_rows, w_lanes), jnp.float32),
            grid_spec=pltpu.PrefetchScalarGridSpec(
                num_scalar_prefetch=0, grid=grid,
                in_specs=[in_spec, in_spec],
                out_specs=acc_spec),
            compiler_params=cparams,
            cost_estimate=cost,
        )(p2d, t2d)
        total = jnp.sum(sq_part)
        wsum_kernel = None

    # Epilogue: exact basicsr weight_reduce_loss semantics.
    if w_mode == "scalar":
        total = total * w_orig.reshape(()).astype(jnp.float32)

    if reduction == "sum":
        res = total
    elif w_mode == "none":
        res = total / jnp.float32(n)
    else:
        if w_mode == "full" and w_orig.shape == pred.shape:
            wsum_orig = wsum_kernel                 # computed in-kernel, free
        else:
            wsum_orig = jnp.sum(w_orig.astype(jnp.float32))   # small original weight
        mult = 1
        if (w_orig.ndim >= 2 and w_orig.shape[1] == 1 and
                len(orig_shape) >= 2 and orig_shape[1] > 1):
            mult = orig_shape[1]                    # weight.sum() * C rule
        res = total / (wsum_orig * jnp.float32(mult))

    return (jnp.float32(loss_weight) * res).astype(out_dtype)


class MSELossPallas:
    """MSE (L2) loss — Pallas TPU implementation of basicsr MSELoss."""

    def __init__(self, loss_weight=1.0, reduction="mean"):
        if reduction not in ("none", "mean", "sum"):
            raise ValueError(f"Unsupported reduction mode: {reduction}")
        self.loss_weight = float(loss_weight)
        self.reduction = reduction

    def __call__(self, pred, target, weight=None, **kwargs):
        has_weight = weight is not None
        if weight is None:
            weight = jnp.zeros((), pred.dtype)     # dummy, unused
        return _mse_loss_impl(pred, target, weight,
                              reduction=self.reduction,
                              loss_weight=self.loss_weight,
                              has_weight=has_weight)


# ---------------------------------------------------------------------------
# Demo / self-check
# ---------------------------------------------------------------------------
if __name__ == "__main__":
    key = jax.random.PRNGKey(0)
    k1, k2, k3 = jax.random.split(key, 3)
    N, C, H, W = 2, 4, 16, 16
    pred = jax.random.normal(k1, (N, C, H, W), dtype=jnp.float32)
    target = jax.random.normal(k2, (N, C, H, W), dtype=jnp.float32)
    weight = jax.random.uniform(k3, (N, C, H, W), dtype=jnp.float32)

    # default: mean, no weight
    out = jax.block_until_ready(MSELossPallas()(pred, target))
    ref = jnp.mean((pred - target) ** 2)
    assert jnp.allclose(out, ref, rtol=1e-5, atol=1e-6)

    # sum reduction
    out = jax.block_until_ready(MSELossPallas(reduction="sum")(pred, target))
    ref = jnp.sum((pred - target) ** 2)
    assert jnp.allclose(out, ref, rtol=1e-5, atol=1e-4)

    # none + full weight + non-unit loss_weight (folded into kernel)
    out = jax.block_until_ready(
        MSELossPallas(loss_weight=0.5, reduction="none")(pred, target, weight))
    ref = 0.5 * (pred - target) ** 2 * weight
    assert out.shape == (N, C, H, W)
    assert jnp.allclose(out, ref, rtol=1e-5, atol=1e-6)

    # mean + full weight (basicsr: denom = weight.sum())
    out = jax.block_until_ready(MSELossPallas()(pred, target, weight))
    ref = jnp.sum((pred - target) ** 2 * weight) / jnp.sum(weight)
    assert jnp.allclose(out, ref, rtol=1e-5, atol=1e-6)

    # size-1 weight (basicsr: denom = weight.sum() * C), scalar-fold path
    w_sc = jnp.full((1, 1, 1, 1), 0.3, dtype=jnp.float32)
    out = jax.block_until_ready(MSELossPallas()(pred, target, w_sc))
    ref = jnp.sum((pred - target) ** 2 * 0.3) / (0.3 * C)
    assert jnp.allclose(out, ref, rtol=1e-5, atol=1e-6)
    out = jax.block_until_ready(
        MSELossPallas(reduction="none")(pred, target, w_sc))
    ref = (pred - target) ** 2 * 0.3
    assert jnp.allclose(out, ref, rtol=1e-5, atol=1e-6)

    # ragged total size (not divisible by 128): copy-free fallback layout
    kr1, kr2 = jax.random.split(jax.random.PRNGKey(2), 2)
    pr = jax.random.normal(kr1, (2, 3, 5, 40), dtype=jnp.float32)
    tr = jax.random.normal(kr2, (2, 3, 5, 40), dtype=jnp.float32)
    out = jax.block_until_ready(MSELossPallas()(pr, tr))
    ref = jnp.mean((pr - tr) ** 2)
    assert jnp.allclose(out, ref, rtol=1e-5, atol=1e-6)
    out = jax.block_until_ready(
        MSELossPallas(loss_weight=2.0, reduction="none")(pr, tr))
    ref = 2.0 * (pr - tr) ** 2
    assert jnp.allclose(out, ref, rtol=1e-5, atol=1e-6)

    # larger cases: multi-block grid, (8,w) accumulators, optional core split
    kb1, kb2, kb3 = jax.random.split(jax.random.PRNGKey(1), 3)
    pb = jax.random.normal(kb1, (4, 4, 512, 512), dtype=jnp.float32)
    tb = jax.random.normal(kb2, (4, 4, 512, 512), dtype=jnp.float32)
    wb = jax.random.uniform(kb3, (4, 4, 512, 512), dtype=jnp.float32)
    out = jax.block_until_ready(MSELossPallas()(pb, tb))
    ref = jnp.mean((pb - tb) ** 2)
    assert jnp.allclose(out, ref, rtol=2e-5, atol=1e-6)
    out = jax.block_until_ready(MSELossPallas()(pb, tb, wb))
    ref = jnp.sum((pb - tb) ** 2 * wb) / jnp.sum(wb)
    assert jnp.allclose(out, ref, rtol=2e-5, atol=1e-6)

    # large ragged case: multi-block + pl.when-gated in-kernel tail mask
    kg1, kg2 = jax.random.split(jax.random.PRNGKey(3), 2)
    pg = jax.random.normal(kg1, (1, 3, 1501, 1000), dtype=jnp.float32)
    tg = jax.random.normal(kg2, (1, 3, 1501, 1000), dtype=jnp.float32)
    out = jax.block_until_ready(MSELossPallas(reduction="sum")(pg, tg))
    ref = jnp.sum((pg - tg) ** 2)
    assert jnp.allclose(out, ref, rtol=2e-5, atol=1e-2)

    print("KERNEL_OK")
</pallas_src>

<mosaic_0001>
module attributes {stable_mosaic.version = 11 : i64} {
  func.func @_sq_sum_kernel(%arg0: i32, %arg1: memref<4x512xf32, #tpu.memory_space<vmem>>, %arg2: memref<4x512xf32, #tpu.memory_space<vmem>>, %arg3: memref<1x1x512xf32, #tpu.memory_space<vmem>>) attributes {dimension_semantics = [#tpu.dimension_semantics<arbitrary>], iteration_bounds = array<i64: 1>, scalar_prefetch = 0 : i64, scratch_operands = 0 : i64, tpu.core_type = #tpu.core_type<tc>, window_params = [{transform_indices = @transform_0, window_bounds = array<i64: 4, 512>}, {transform_indices = @transform_1, window_bounds = array<i64: 4, 512>}, {pipeline_mode = #tpu.pipeline_mode<synchronous>, transform_indices = @transform_2, window_bounds = array<i64: 1, 1, 512>}]} {
    %c0_i32 = arith.constant 0 : i32
    %0 = arith.cmpi eq, %arg0, %c0_i32 : i32
    %1 = arith.extui %0 : i1 to i32
    %c0_i32_0 = arith.constant 0 : i32
    %2 = arith.cmpi ne, %1, %c0_i32_0 : i32
    scf.if %2 {
      %cst_10 = arith.constant 0.000000e+00 : f32
      %13 = vector.broadcast %cst_10 : f32 to vector<1x1x512xf32>
      %c0_11 = arith.constant 0 : index
      %c0_12 = arith.constant 0 : index
      %c0_13 = arith.constant 0 : index
      %14 = vector.load %arg3[%c0_11, %c0_12, %c0_13] : memref<1x1x512xf32, #tpu.memory_space<vmem>>, vector<1x1x512xf32>
      tpu.vector_store %arg3[%c0_11, %c0_12, %c0_13], %13 {strides = array<i32>} : memref<1x1x512xf32, #tpu.memory_space<vmem>>, vector<1x1x512xf32>,
    } else {
    }
    %c0 = arith.constant 0 : index
    %c0_1 = arith.constant 0 : index
    %3 = vector.load %arg1[%c0, %c0_1] : memref<4x512xf32, #tpu.memory_space<vmem>>, vector<4x512xf32>
    %c0_2 = arith.constant 0 : index
    %c0_3 = arith.constant 0 : index
    %4 = vector.load %arg2[%c0_2, %c0_3] : memref<4x512xf32, #tpu.memory_space<vmem>>, vector<4x512xf32>
    %5 = arith.subf %3, %4 : vector<4x512xf32>
    %6 = arith.mulf %5, %5 : vector<4x512xf32>
    %cst = arith.constant dense<0.000000e+00> : vector<512xf32>
    %7 = vector.multi_reduction <add>, %6, %cst [0] : vector<4x512xf32> to vector<512xf32>
    %8 = vector.shape_cast %7 : vector<512xf32> to vector<1x512xf32>
    %c0_4 = arith.constant 0 : index
    %c0_5 = arith.constant 0 : index
    %c0_6 = arith.constant 0 : index
    %9 = vector.load %arg3[%c0_4, %c0_5, %c0_6] : memref<1x1x512xf32, #tpu.memory_space<vmem>>, vector<1x1x512xf32>
    %10 = vector.shape_cast %8 : vector<1x512xf32> to vector<1x1x512xf32>
    %11 = arith.addf %9, %10 : vector<1x1x512xf32>
    %c0_7 = arith.constant 0 : index
    %c0_8 = arith.constant 0 : index
    %c0_9 = arith.constant 0 : index
    %12 = vector.load %arg3[%c0_7, %c0_8, %c0_9] : memref<1x1x512xf32, #tpu.memory_space<vmem>>, vector<1x1x512xf32>
    tpu.vector_store %arg3[%c0_7, %c0_8, %c0_9], %11 {strides = array<i32>} : memref<1x1x512xf32, #tpu.memory_space<vmem>>, vector<1x1x512xf32>,
    return
  }
  func.func @transform_0(%arg0: i32) -> (i32, i32) {
    %c0_i32 = arith.constant 0 : i32
    %c0_i32_0 = arith.constant 0 : i32
    return %arg0, %c0_i32 : i32, i32
  }
  func.func @transform_1(%arg0: i32) -> (i32, i32) {
    %c0_i32 = arith.constant 0 : i32
    %c0_i32_0 = arith.constant 0 : i32
    return %arg0, %c0_i32 : i32, i32
  }
  func.func @transform_2(%arg0: i32) -> (i32, i32, i32) {
    %c0_i32 = arith.constant 0 : i32
    %c0_i32_0 = arith.constant 0 : i32
    %c0_i32_1 = arith.constant 0 : i32
    %c0_i32_2 = arith.constant 0 : i32
    return %c0_i32, %c0_i32_0, %c0_i32_1 : i32, i32, i32
  }
}

</mosaic_0001>

<llo_original>
// kernel: _mse_loss_impl.1
$region0: #{_mse_loss_impl.1}
  #allocation0 [shape = 'u32[]', space=smem, size = 0x4, offset = 0x4, fixed_abs, tag = 'smem constant byte address 0x4 - core index']
  #allocation1 [shape = 'u32[72,128]{1,0:T(1,128)}', space=vmem, size = 0x9000, scoped, tag = 'internal scratch']
  %s0 = inlined_call_operand.vmem [shape: f32[4,512], index: 0, kind: input, shape index: {}]
  %s1 = inlined_call_operand.vmem [shape: f32[4,512], index: 1, kind: input, shape index: {}]
  %s2 = inlined_call_operand.vmem [shape: f32[1,1,512], index: 2, kind: output, shape index: {}]
  %s3 = sld [smem:[#allocation0]]
  $region22: #{_mse_loss_impl.1} parent=0
    _
  %s5 = ssub.s32 1, %s3
  %s6 = scalar_select 0, %s5, %s3
  // Predicated region
  $region2: #{_mse_loss_impl.1} parent=0 // pred_check
    _
  $region3: #{_mse_loss_impl.1} parent=0 // pred_check_branch
    %8 = sbr.rel (0) target = $region5
  $region4: #{_mse_loss_impl.1} parent=0 // pred_region
    _
  $region5: #{_mse_loss_impl.1} parent=0 // pred_fallthru
    _
  // Predicated region
  $region6: #{_mse_loss_impl.1} parent=0 // pred_check
    _
  $region7: #{_mse_loss_impl.1} parent=0 // pred_check_branch
    %10 = sbr.rel (0) target = $region9
  $region8: #{_mse_loss_impl.1} parent=0 // pred_region
    _
  $region9: #{_mse_loss_impl.1} parent=0 // pred_fallthru
    _
  %p11 = scmp.eq.s32.totalorder 0, 0
  // Predicated region
  $region10: #{_mse_loss_impl.1} parent=0 // pred_check
    %p12 = pneg %p11
  $region11: #{_mse_loss_impl.1} parent=0 // pred_check_branch
    %14 = sbr.rel (%p12) target = $region13
  $region12: #{_mse_loss_impl.1} parent=0 // pred_region
    %v15 = vlaneseq
    %vm16 = vcmp.ge.s32.totalorder %v15, 0
    %vm17 = vcmp.lt.s32.totalorder %v15, 512
    %vm18 = vmand %vm16, %vm17
    %19 = vst.msk [vmem:[%s2] sm:$0xf] %vm18, 0.0
  $region13: #{_mse_loss_impl.1} parent=0 // pred_fallthru
    _
  %v20 = vld [vmem:[%s0] sm:$0xff]
  %v21 = vld [vmem:[%s0 + $0x8] sm:$0xff]
  %v22 = vld [vmem:[%s1] sm:$0xff]
  %v23 = vld [vmem:[%s1 + $0x8] sm:$0xff]
  %v24 = vsub.f32 %v20, %v22
  %v25 = vsub.f32 %v21, %v23
  %v26 = vmul.f32 %v24, %v24
  %v27 = vmul.f32 %v25, %v25
  %30 = vst [vmem:[#allocation1] ss:$2 sm:$0xff] %v26
  %s31 = scalar_lea.vmem [#allocation1], 16
  %32 = vst [vmem:[%s31] ss:$2 sm:$0xff] %v27
  %v33 = vld.sshfl [vmem:[#allocation1] sm:$0xff pattern:$0x75316420]
  %v34 = vld.sshfl [vmem:[#allocation1 + $0x8] sm:$0xff pattern:$0x75316420]
  %v35 = vld.sshfl [vmem:[#allocation1 + $0x10] sm:$0xff pattern:$0x75316420]
  %v36 = vld.sshfl [vmem:[#allocation1 + $0x18] sm:$0xff pattern:$0x75316420]
  %vm41 = vcmask 1043456
  %v42 = vsel %vm41, %v33, 0.0
  %v43 = vrot.slane %v42, 4
  %v44 = vadd.f32 %v42, %v43
  %v45 = vrot.slane %v44, 2
  %v46 = vadd.f32 %v44, %v45
  %v47 = vrot.slane %v46, 1
  %v48 = vadd.f32 %v46, %v47
  %v49 = vsel %vm41, %v34, 0.0
  %v50 = vrot.slane %v49, 4
  %v51 = vadd.f32 %v49, %v50
  %v52 = vrot.slane %v51, 2
  %v53 = vadd.f32 %v51, %v52
  %v54 = vrot.slane %v53, 1
  %v55 = vadd.f32 %v53, %v54
  %v56 = vsel %vm41, %v35, 0.0
  %v57 = vrot.slane %v56, 4
  %v58 = vadd.f32 %v56, %v57
  %v59 = vrot.slane %v58, 2
  %v60 = vadd.f32 %v58, %v59
  %v61 = vrot.slane %v60, 1
  %v62 = vadd.f32 %v60, %v61
  %v63 = vsel %vm41, %v36, 0.0
  %v64 = vrot.slane %v63, 4
  %v65 = vadd.f32 %v63, %v64
  %v66 = vrot.slane %v65, 2
  %v67 = vadd.f32 %v65, %v66
  %v68 = vrot.slane %v67, 1
  %v69 = vadd.f32 %v67, %v68
  %v70 = vld [vmem:[%s2] sm:$0xf]
  %v75 = vrot.slane %v55, 7
  %v76 = vrot.slane %v62, 6
  %v77 = vrot.slane %v69, 5
  %vm78 = vcmask 1040384
  %v79 = vsel %vm78, %v48, %v75
  %vm80 = vcmask 1042434
  %v81 = vsel %vm80, %v76, %v77
  %vm82 = vcmask 1041408
  %v83 = vsel %vm82, %v79, %v81
  %v85 = vadd.f32 %v70, %v83
  %v86 = vlaneseq
  %vm87 = vcmp.ge.s32.totalorder %v86, 0
  %vm88 = vcmp.lt.s32.totalorder %v86, 512
  %vm89 = vmand %vm87, %vm88
  %90 = vst.msk [vmem:[%s2] sm:$0xf] %vm89, %v85
  // Predicated region
  $region14: #{_mse_loss_impl.1} parent=0 // pred_check
    _
  $region15: #{_mse_loss_impl.1} parent=0 // pred_check_branch
    %92 = sbr.rel (0) target = $region17
  $region16: #{_mse_loss_impl.1} parent=0 // pred_region
    _
  $region17: #{_mse_loss_impl.1} parent=0 // pred_fallthru
    _
  // Predicated region
  $region18: #{_mse_loss_impl.1} parent=0 // pred_check
    _
  $region19: #{_mse_loss_impl.1} parent=0 // pred_check_branch
    %94 = sbr.rel (0) target = $region21
  $region20: #{_mse_loss_impl.1} parent=0 // pred_region
    _
  $region21: #{_mse_loss_impl.1} parent=0 // pred_fallthru
    _

</llo_original>
